<compile_context>
chip_gen: v7x
topology: tpu7x:2x2x1
jax: 0.10.0
libtpu: 0.0.40
codegen_flags: <defaults>
</compile_context>

<pallas_src>
import jax
import jax.numpy as jnp
import numpy as np
from jax import lax
from jax.experimental import pallas as pl
from jax.experimental.pallas import tpu as pltpu


# ----------------------------------------------------------------------------
# Fused kernel: ConvLSTM cell (zero state) -> bilinear x2 upsample ->
# Conv2d(Ch->Ch, 3, stride=1, pad=1) + bias + ReLU.  One grid step per batch.
# ----------------------------------------------------------------------------
def _make_fused_kernel(H, W, Cin, Ch):
    WCI = W * Cin          # lanes of one input row
    WC = W * Ch            # lanes of one hidden row

    def kernel(x_ref, gw_ref, gb_ref, fw_ref, cb_ref, out_ref):
        # ---- ConvLSTM gate conv (h_prev == 0, c_prev == 0) ------------------
        # x rows y-1 / y / y+1 (zero padded) concatenated on the lane axis; the
        # 3x3 column structure lives in the banded weight gw (3*W*Cin, 3*W*Ch).
        xb = x_ref[0]                                            # (H, W*Cin) bf16
        zx = jnp.zeros((1, WCI), xb.dtype)
        x_cat = jnp.concatenate(
            [jnp.concatenate([zx, xb[:-1]], axis=0),             # rows y-1
             xb,                                                 # rows y
             jnp.concatenate([xb[1:], zx], axis=0)],             # rows y+1
            axis=-1)                                             # (H, 3*W*Cin)
        gates = jnp.dot(x_cat, gw_ref[...],
                        preferred_element_type=jnp.float32) + gb_ref[...]
        # lane blocks: [in | out | cell]; forget gate dropped (c_prev == 0)
        i_g = jax.nn.sigmoid(gates[:, 0 * WC:1 * WC])
        o_g = jax.nn.sigmoid(gates[:, 1 * WC:2 * WC])
        g_g = jnp.tanh(gates[:, 2 * WC:3 * WC])
        hid = o_g * jnp.tanh(i_g * g_g)                          # (H, W*Ch) f32

        # ---- bilinear x2 row lerp (align_corners=False, edge clamped) -------
        h_up = jnp.concatenate([hid[0:1], hid[:-1]], axis=0)     # hid[k-1]
        h_dn = jnp.concatenate([hid[1:], hid[-1:]], axis=0)      # hid[k+1]
        row_e = (0.25 * h_up + 0.75 * hid).astype(jnp.bfloat16)  # U row 2k
        row_o = (0.75 * hid + 0.25 * h_dn).astype(jnp.bfloat16)  # U row 2k+1

        # ---- x2 column lerp + Conv2d(Ch->Ch, 3, pad 1) + bias + ReLU --------
        # The column lerp and the conv's dx taps are folded into the banded
        # weight fw (3*W*Ch, 2*W*Ch); one matmul covers both output-row
        # parities by stacking them along M.
        zr = jnp.zeros((1, WC), jnp.bfloat16)
        ro_up = jnp.concatenate([zr, row_o[:-1]], axis=0)        # U row 2k-1 (conv zero pad)
        re_dn = jnp.concatenate([row_e[1:], zr], axis=0)         # U row 2k+2 (conv zero pad)
        cat_e = jnp.concatenate([ro_up, row_e, row_o], axis=-1)  # taps of out row 2k
        cat_o = jnp.concatenate([row_e, row_o, re_dn], axis=-1)  # taps of out row 2k+1
        cat = jnp.concatenate([cat_e, cat_o], axis=0)            # (2H, 3*W*Ch)
        res = jnp.dot(cat, fw_ref[...],
                      preferred_element_type=jnp.float32) + cb_ref[...]
        res = jnp.maximum(res, 0.0)                              # activation='relu'
        out_ref[0, 0, :, :] = res[:H]                            # output rows 2k
        out_ref[0, 1, :, :] = res[H:]                            # output rows 2k+1

    return kernel


# ----------------------------------------------------------------------------
# Host-side (numpy) weight prep: zero-state specialisation + fold the W
# structure of both convs and of the x2 column lerp into banded matrices.
# ----------------------------------------------------------------------------
def prepare_banded_params(params, *, in_channels, height, width,
                          kernel_size=3, stride=1, padding=1):
    if kernel_size != 3 or padding != 1 or stride != 1:
        # TODO(synk): general kernel_size / padding / stride of the final conv.
        raise NotImplementedError("fused path assumes kernel_size=3, stride=1, padding=1")
    Cin, H, W = in_channels, height, width
    Ch = int(params["gates_w"].shape[-1]) // 4

    gates_w = np.asarray(params["gates_w"], np.float32)   # (3,3,Cin+Ch,4*Ch) HWIO
    gates_b = np.asarray(params["gates_b"], np.float32)   # (4*Ch,)
    conv_w = np.asarray(params["conv_w"], np.float32)     # (3,3,Ch,Ch)  HWIO
    conv_b = np.asarray(params["conv_b"], np.float32)     # (Ch,)

    # --- ConvLSTM gate conv, specialised to the zero initial state: keep only
    #     the x input channels (h_prev == 0) and the (in, out, cell) gates
    #     (the forget gate only multiplies c_prev == 0). ----------------------
    wg = gates_w[:, :, :Cin, :].reshape(3, 3, Cin, 4, Ch)[:, :, :, [0, 2, 3], :]
    gate_w = np.zeros((3, W * Cin, 3 * W * Ch), np.float32)
    for dy in range(3):
        for dx in range(3):
            for jo in range(W):
                ji = jo + dx - 1
                if 0 <= ji < W:                            # conv zero padding in W
                    for g in range(3):
                        gate_w[dy,
                               ji * Cin:(ji + 1) * Cin,
                               g * W * Ch + jo * Ch:g * W * Ch + (jo + 1) * Ch] = \
                            wg[dy, dx, :, g, :]
    gate_w = gate_w.reshape(3 * W * Cin, 3 * W * Ch)
    gate_b = np.tile(gates_b.reshape(4, Ch)[[0, 2, 3]][:, None, :],
                     (1, W, 1)).reshape(1, 3 * W * Ch)

    # --- bilinear x2 column lerp (align_corners=False), as a (2W, W) matrix --
    lcol = np.zeros((2 * W, W), np.float32)
    for xu in range(2 * W):
        src = max((xu + 0.5) * 0.5 - 0.5, 0.0)
        j0 = int(np.floor(src))
        j1 = min(j0 + 1, W - 1)
        lam = src - j0
        lcol[xu, j0] += 1.0 - lam
        lcol[xu, j1] += lam

    # --- column lerp folded into Conv2d(Ch -> Ch, 3, stride 1, pad 1) --------
    up_conv_w = np.zeros((3, W * Ch, 2 * W * Ch), np.float32)
    for dy in range(3):
        for dxo in range(3):
            for xo in range(2 * W):
                xu = xo + dxo - 1
                if not (0 <= xu < 2 * W):                  # conv zero padding in W
                    continue
                for j in range(W):
                    lw = lcol[xu, j]
                    if lw != 0.0:
                        up_conv_w[dy,
                                  j * Ch:(j + 1) * Ch,
                                  xo * Ch:(xo + 1) * Ch] += lw * conv_w[dy, dxo]
    up_conv_w = up_conv_w.reshape(3 * W * Ch, 2 * W * Ch)
    up_conv_b = np.tile(conv_b, 2 * W).reshape(1, 2 * W * Ch)

    # bf16 matmul operands (f32 accumulation inside the kernel), f32 biases.
    return dict(gate_w=jnp.asarray(gate_w, jnp.bfloat16),
                gate_b=jnp.asarray(gate_b, jnp.float32),
                up_conv_w=jnp.asarray(up_conv_w, jnp.bfloat16),
                up_conv_b=jnp.asarray(up_conv_b, jnp.float32))


# ----------------------------------------------------------------------------
# Wrapper: lane-dense layout plumbing + single pallas_call (grid over batch).
# ----------------------------------------------------------------------------
def recurrent_upconv_forward(x_nchw, banded, prev_state=None):
    # TODO(synk): state-carrying calls (prev_state != None), the ConvGRU branch
    # and norm='BN'/'IN' are not implemented by this fused first-call fast path.
    if prev_state is not None:
        raise NotImplementedError("only the zero-state first call is fused")
    B, Cin, H, W = x_nchw.shape
    Ch = banded["up_conv_b"].shape[-1] // (2 * W)

    # lane-dense input: NCHW -> NHWC -> (B, H, W*Cin) (free row-major reshape)
    x = jnp.transpose(x_nchw, (0, 2, 3, 1)).astype(jnp.bfloat16).reshape(B, H, W * Cin)

    out_raw = pl.pallas_call(
        _make_fused_kernel(H, W, Cin, Ch),
        out_shape=jax.ShapeDtypeStruct((B, 2, H, 2 * W * Ch), jnp.float32),
        grid=(B,),
        in_specs=[
            pl.BlockSpec((1, H, W * Cin), lambda b: (b, 0, 0)),
            pl.BlockSpec((3 * W * Cin, 3 * W * Ch), lambda b: (0, 0)),
            pl.BlockSpec((1, 3 * W * Ch), lambda b: (0, 0)),
            pl.BlockSpec((3 * W * Ch, 2 * W * Ch), lambda b: (0, 0)),
            pl.BlockSpec((1, 2 * W * Ch), lambda b: (0, 0)),
        ],
        out_specs=pl.BlockSpec((1, 2, H, 2 * W * Ch), lambda b: (b, 0, 0, 0)),
        compiler_params=pltpu.CompilerParams(dimension_semantics=("parallel",)),
    )(x, banded["gate_w"], banded["gate_b"],
      banded["up_conv_w"], banded["up_conv_b"])

    # (b, row parity, k, col*Ch + c) -> NCHW (b, c, 2k+parity, col).  The first
    # reshape is a free row-major un-flatten of the lane axis.
    out = out_raw.reshape(B, 2, H, 2 * W, Ch)
    out = jnp.transpose(out, (0, 4, 2, 1, 3)).reshape(B, Ch, 2 * H, 2 * W)
    return out


# ----------------------------------------------------------------------------
# Pure-JAX reference (independent implementation, full un-specialised math).
# ----------------------------------------------------------------------------
def _ref_bilinear_x2(x):  # NHWC, PyTorch align_corners=False semantics
    B, H, W, C = x.shape

    def idx(out_size, in_size):
        d = jnp.arange(out_size, dtype=jnp.float32)
        src = jnp.maximum((d + 0.5) * 0.5 - 0.5, 0.0)
        i0 = jnp.floor(src).astype(jnp.int32)
        i1 = jnp.minimum(i0 + 1, in_size - 1)
        lam = src - i0.astype(jnp.float32)
        return i0, i1, lam

    r0, r1, rl = idx(2 * H, H)
    c0, c1, cl = idx(2 * W, W)
    xr = (x[:, r0, :, :] * (1.0 - rl)[None, :, None, None]
          + x[:, r1, :, :] * rl[None, :, None, None])
    return (xr[:, :, c0, :] * (1.0 - cl)[None, None, :, None]
            + xr[:, :, c1, :] * cl[None, None, :, None])


def ref_forward(x_nchw, params, kernel_size, padding):
    x = jnp.transpose(x_nchw, (0, 2, 3, 1)).astype(jnp.float32)
    B, H, W, Cin = x.shape
    Ch = params["gates_w"].shape[-1] // 4
    dn = ("NHWC", "HWIO", "NHWC")
    h_prev = jnp.zeros((B, H, W, Ch), jnp.float32)
    c_prev = jnp.zeros((B, H, W, Ch), jnp.float32)
    stacked = jnp.concatenate([x, h_prev], axis=-1)
    gates = lax.conv_general_dilated(stacked, params["gates_w"], (1, 1),
                                     [(1, 1), (1, 1)],
                                     dimension_numbers=dn) + params["gates_b"]
    i_g, f_g, o_g, g_g = jnp.split(gates, 4, axis=-1)
    cell = jax.nn.sigmoid(f_g) * c_prev + jax.nn.sigmoid(i_g) * jnp.tanh(g_g)
    hid = jax.nn.sigmoid(o_g) * jnp.tanh(cell)
    up = _ref_bilinear_x2(hid)
    out = lax.conv_general_dilated(up, params["conv_w"], (1, 1),
                                   [(padding, padding), (padding, padding)],
                                   dimension_numbers=dn) + params["conv_b"]
    out = jnp.maximum(out, 0.0)
    return jnp.transpose(out, (0, 3, 1, 2))


if __name__ == "__main__":
    B, Cin, H, W = 2, 4, 16, 16     # x: (batch, in_channels, H, W)
    Ch = 8                          # out_channels (== ConvLSTM hidden size)
    K, PAD = 3, 1                   # final conv: kernel_size=3, stride=1, padding=1

    key = jax.random.PRNGKey(0)
    k1, k2, k3, k4, k5 = jax.random.split(key, 5)
    params = {
        # ConvLSTM gate conv: Conv2d(Cin+Ch -> 4*Ch, 3, padding=1), HWIO layout
        "gates_w": 0.1 * jax.random.normal(k1, (3, 3, Cin + Ch, 4 * Ch), jnp.float32),
        "gates_b": 0.05 * jax.random.normal(k2, (4 * Ch,), jnp.float32),
        # post-upsample conv: Conv2d(Ch -> Ch, K, stride=1, padding=PAD), HWIO
        "conv_w": 0.1 * jax.random.normal(k3, (K, K, Ch, Ch), jnp.float32),
        "conv_b": 0.05 * jax.random.normal(k4, (Ch,), jnp.float32),
    }
    x = jax.random.normal(k5, (B, Cin, H, W), jnp.float32)

    banded = prepare_banded_params(params, in_channels=Cin, height=H, width=W,
                                   kernel_size=K, stride=1, padding=PAD)
    fwd = jax.jit(recurrent_upconv_forward)
    out = jax.block_until_ready(fwd(x, banded))
    assert out.shape == (B, Ch, 2 * H, 2 * W), out.shape

    ref = ref_forward(x, params, K, PAD)
    # bf16 matmul operands (f32 accumulation) loosen accuracy slightly vs the
    # all-f32 reference.
    np.testing.assert_allclose(np.asarray(out), np.asarray(ref),
                               rtol=2e-2, atol=5e-3)
    print("KERNEL_OK")
</pallas_src>

<mosaic_0001>
module attributes {stable_mosaic.version = 11 : i64} {
  func.func @kernel(%arg0: i32, %arg1: memref<1x16x64xbf16, #tpu.memory_space<vmem>>, %arg2: memref<192x384xbf16, #tpu.memory_space<vmem>>, %arg3: memref<1x384xf32, #tpu.memory_space<vmem>>, %arg4: memref<384x256xbf16, #tpu.memory_space<vmem>>, %arg5: memref<1x256xf32, #tpu.memory_space<vmem>>, %arg6: memref<1x2x16x256xf32, #tpu.memory_space<vmem>>) attributes {dimension_semantics = [#tpu.dimension_semantics<parallel>], iteration_bounds = array<i64: 2>, scalar_prefetch = 0 : i64, scratch_operands = 0 : i64, tpu.core_type = #tpu.core_type<tc>, window_params = [{transform_indices = @transform_0, window_bounds = array<i64: 1, 16, 64>}, {pipeline_mode = #tpu.pipeline_mode<synchronous>, transform_indices = @transform_1, window_bounds = array<i64: 192, 384>}, {pipeline_mode = #tpu.pipeline_mode<synchronous>, transform_indices = @transform_2, window_bounds = array<i64: 1, 384>}, {pipeline_mode = #tpu.pipeline_mode<synchronous>, transform_indices = @transform_3, window_bounds = array<i64: 384, 256>}, {pipeline_mode = #tpu.pipeline_mode<synchronous>, transform_indices = @transform_4, window_bounds = array<i64: 1, 256>}, {transform_indices = @transform_5, window_bounds = array<i64: 1, 2, 16, 256>}]} {
    %c0 = arith.constant 0 : index
    %c0_0 = arith.constant 0 : index
    %c0_1 = arith.constant 0 : index
    %0 = vector.load %arg1[%c0, %c0_0, %c0_1] : memref<1x16x64xbf16, #tpu.memory_space<vmem>>, vector<1x16x64xbf16>
    %1 = vector.shape_cast %0 : vector<1x16x64xbf16> to vector<16x64xbf16>
    %cst = arith.constant 0.000000e+00 : bf16
    %2 = vector.broadcast %cst : bf16 to vector<1x64xbf16>
    %3 = vector.extract_strided_slice %1 {offsets = [0, 0], sizes = [15, 64], strides = [1, 1]} : vector<16x64xbf16> to vector<15x64xbf16>
    %4 = tpu.concatenate %2, %3 in 0 : vector<1x64xbf16>, vector<15x64xbf16> -> vector<16x64xbf16>
    %5 = vector.extract_strided_slice %1 {offsets = [1, 0], sizes = [15, 64], strides = [1, 1]} : vector<16x64xbf16> to vector<15x64xbf16>
    %6 = tpu.concatenate %5, %2 in 0 : vector<15x64xbf16>, vector<1x64xbf16> -> vector<16x64xbf16>
    %7 = tpu.concatenate %4, %1, %6 in 1 : vector<16x64xbf16>, vector<16x64xbf16>, vector<16x64xbf16> -> vector<16x192xbf16>
    %c0_2 = arith.constant 0 : index
    %c0_3 = arith.constant 0 : index
    %8 = vector.load %arg2[%c0_2, %c0_3] : memref<192x384xbf16, #tpu.memory_space<vmem>>, vector<192x384xbf16>
    %cst_4 = arith.constant dense<0.000000e+00> : vector<16x384xf32>
    %9 = tpu.matmul %7, %8, %cst_4 {dimension_numbers = #tpu.dot_dimension_numbers<[1], [0], [0], [1], [0, 0, 1, 1], [], []>} : vector<16x192xbf16>, vector<192x384xbf16>, vector<16x384xf32> -> vector<16x384xf32>
    %c0_5 = arith.constant 0 : index
    %c0_6 = arith.constant 0 : index
    %10 = vector.load %arg3[%c0_5, %c0_6] : memref<1x384xf32, #tpu.memory_space<vmem>>, vector<1x384xf32>
    %11 = vector.broadcast %10 : vector<1x384xf32> to vector<16x384xf32>
    %12 = arith.addf %9, %11 : vector<16x384xf32>
    %13 = vector.extract_strided_slice %12 {offsets = [0, 0], sizes = [16, 128], strides = [1, 1]} : vector<16x384xf32> to vector<16x128xf32>
    %14 = arith.negf %13 : vector<16x128xf32>
    %15 = math.exp %14 : vector<16x128xf32>
    %cst_7 = arith.constant 1.000000e+00 : f32
    %16 = vector.broadcast %cst_7 : f32 to vector<16x128xf32>
    %17 = arith.addf %16, %15 : vector<16x128xf32>
    %18 = arith.divf %16, %17 : vector<16x128xf32>
    %19 = vector.extract_strided_slice %12 {offsets = [0, 128], sizes = [16, 128], strides = [1, 1]} : vector<16x384xf32> to vector<16x128xf32>
    %20 = arith.negf %19 : vector<16x128xf32>
    %21 = math.exp %20 : vector<16x128xf32>
    %cst_8 = arith.constant 1.000000e+00 : f32
    %22 = vector.broadcast %cst_8 : f32 to vector<16x128xf32>
    %23 = arith.addf %22, %21 : vector<16x128xf32>
    %24 = arith.divf %22, %23 : vector<16x128xf32>
    %25 = vector.extract_strided_slice %12 {offsets = [0, 256], sizes = [16, 128], strides = [1, 1]} : vector<16x384xf32> to vector<16x128xf32>
    %26 = math.tanh %25 : vector<16x128xf32>
    %27 = arith.mulf %18, %26 : vector<16x128xf32>
    %28 = math.tanh %27 : vector<16x128xf32>
    %29 = arith.mulf %24, %28 : vector<16x128xf32>
    %30 = vector.extract_strided_slice %29 {offsets = [0, 0], sizes = [1, 128], strides = [1, 1]} : vector<16x128xf32> to vector<1x128xf32>
    %31 = vector.extract_strided_slice %29 {offsets = [0, 0], sizes = [15, 128], strides = [1, 1]} : vector<16x128xf32> to vector<15x128xf32>
    %32 = tpu.concatenate %30, %31 in 0 : vector<1x128xf32>, vector<15x128xf32> -> vector<16x128xf32>
    %33 = vector.extract_strided_slice %29 {offsets = [1, 0], sizes = [15, 128], strides = [1, 1]} : vector<16x128xf32> to vector<15x128xf32>
    %34 = vector.extract_strided_slice %29 {offsets = [15, 0], sizes = [1, 128], strides = [1, 1]} : vector<16x128xf32> to vector<1x128xf32>
    %35 = tpu.concatenate %33, %34 in 0 : vector<15x128xf32>, vector<1x128xf32> -> vector<16x128xf32>
    %cst_9 = arith.constant 2.500000e-01 : f32
    %36 = vector.broadcast %cst_9 : f32 to vector<16x128xf32>
    %37 = arith.mulf %36, %32 : vector<16x128xf32>
    %cst_10 = arith.constant 7.500000e-01 : f32
    %38 = vector.broadcast %cst_10 : f32 to vector<16x128xf32>
    %39 = arith.mulf %38, %29 : vector<16x128xf32>
    %40 = arith.addf %37, %39 : vector<16x128xf32>
    %41 = arith.truncf %40 : vector<16x128xf32> to vector<16x128xbf16>
    %cst_11 = arith.constant 7.500000e-01 : f32
    %42 = vector.broadcast %cst_11 : f32 to vector<16x128xf32>
    %43 = arith.mulf %42, %29 : vector<16x128xf32>
    %cst_12 = arith.constant 2.500000e-01 : f32
    %44 = vector.broadcast %cst_12 : f32 to vector<16x128xf32>
    %45 = arith.mulf %44, %35 : vector<16x128xf32>
    %46 = arith.addf %43, %45 : vector<16x128xf32>
    %47 = arith.truncf %46 : vector<16x128xf32> to vector<16x128xbf16>
    %cst_13 = arith.constant 0.000000e+00 : bf16
    %48 = vector.broadcast %cst_13 : bf16 to vector<1x128xbf16>
    %49 = vector.extract_strided_slice %47 {offsets = [0, 0], sizes = [15, 128], strides = [1, 1]} : vector<16x128xbf16> to vector<15x128xbf16>
    %50 = tpu.concatenate %48, %49 in 0 : vector<1x128xbf16>, vector<15x128xbf16> -> vector<16x128xbf16>
    %51 = vector.extract_strided_slice %41 {offsets = [1, 0], sizes = [15, 128], strides = [1, 1]} : vector<16x128xbf16> to vector<15x128xbf16>
    %52 = tpu.concatenate %51, %48 in 0 : vector<15x128xbf16>, vector<1x128xbf16> -> vector<16x128xbf16>
    %53 = tpu.concatenate %50, %41, %47 in 1 : vector<16x128xbf16>, vector<16x128xbf16>, vector<16x128xbf16> -> vector<16x384xbf16>
    %54 = tpu.concatenate %41, %47, %52 in 1 : vector<16x128xbf16>, vector<16x128xbf16>, vector<16x128xbf16> -> vector<16x384xbf16>
    %55 = tpu.concatenate %53, %54 in 0 : vector<16x384xbf16>, vector<16x384xbf16> -> vector<32x384xbf16>
    %c0_14 = arith.constant 0 : index
    %c0_15 = arith.constant 0 : index
    %56 = vector.load %arg4[%c0_14, %c0_15] : memref<384x256xbf16, #tpu.memory_space<vmem>>, vector<384x256xbf16>
    %cst_16 = arith.constant dense<0.000000e+00> : vector<32x256xf32>
    %57 = tpu.matmul %55, %56, %cst_16 {dimension_numbers = #tpu.dot_dimension_numbers<[1], [0], [0], [1], [0, 0, 1, 1], [], []>} : vector<32x384xbf16>, vector<384x256xbf16>, vector<32x256xf32> -> vector<32x256xf32>
    %c0_17 = arith.constant 0 : index
    %c0_18 = arith.constant 0 : index
    %58 = vector.load %arg5[%c0_17, %c0_18] : memref<1x256xf32, #tpu.memory_space<vmem>>, vector<1x256xf32>
    %59 = vector.broadcast %58 : vector<1x256xf32> to vector<32x256xf32>
    %60 = arith.addf %57, %59 : vector<32x256xf32>
    %cst_19 = arith.constant 0.000000e+00 : f32
    %61 = vector.broadcast %cst_19 : f32 to vector<32x256xf32>
    %62 = arith.maximumf %60, %61 : vector<32x256xf32>
    %63 = vector.extract_strided_slice %62 {offsets = [0, 0], sizes = [16, 256], strides = [1, 1]} : vector<32x256xf32> to vector<16x256xf32>
    %c0_20 = arith.constant 0 : index
    %c0_21 = arith.constant 0 : index
    %c0_22 = arith.constant 0 : index
    %c0_23 = arith.constant 0 : index
    %64 = vector.load %arg6[%c0_20, %c0_21, %c0_22, %c0_23] : memref<1x2x16x256xf32, #tpu.memory_space<vmem>>, vector<1x1x16x256xf32>
    %65 = vector.shape_cast %64 : vector<1x1x16x256xf32> to vector<16x256xf32>
    %66 = vector.shape_cast %63 : vector<16x256xf32> to vector<1x1x16x256xf32>
    tpu.vector_store %arg6[%c0_20, %c0_21, %c0_22, %c0_23], %66 {strides = array<i32>} : memref<1x2x16x256xf32, #tpu.memory_space<vmem>>, vector<1x1x16x256xf32>,
    %67 = vector.extract_strided_slice %62 {offsets = [16, 0], sizes = [16, 256], strides = [1, 1]} : vector<32x256xf32> to vector<16x256xf32>
    %c0_24 = arith.constant 0 : index
    %c1 = arith.constant 1 : index
    %c0_25 = arith.constant 0 : index
    %c0_26 = arith.constant 0 : index
    %68 = vector.load %arg6[%c0_24, %c1, %c0_25, %c0_26] : memref<1x2x16x256xf32, #tpu.memory_space<vmem>>, vector<1x1x16x256xf32>
    %69 = vector.shape_cast %68 : vector<1x1x16x256xf32> to vector<16x256xf32>
    %70 = vector.shape_cast %67 : vector<16x256xf32> to vector<1x1x16x256xf32>
    tpu.vector_store %arg6[%c0_24, %c1, %c0_25, %c0_26], %70 {strides = array<i32>} : memref<1x2x16x256xf32, #tpu.memory_space<vmem>>, vector<1x1x16x256xf32>,
    return
  }
  func.func @transform_0(%arg0: i32) -> (i32, i32, i32) {
    %c0_i32 = arith.constant 0 : i32
    %c0_i32_0 = arith.constant 0 : i32
    %c0_i32_1 = arith.constant 0 : i32
    return %arg0, %c0_i32, %c0_i32_0 : i32, i32, i32
  }
  func.func @transform_1(%arg0: i32) -> (i32, i32) {
    %c0_i32 = arith.constant 0 : i32
    %c0_i32_0 = arith.constant 0 : i32
    %c0_i32_1 = arith.constant 0 : i32
    return %c0_i32, %c0_i32_0 : i32, i32
  }
  func.func @transform_2(%arg0: i32) -> (i32, i32) {
    %c0_i32 = arith.constant 0 : i32
    %c0_i32_0 = arith.constant 0 : i32
    %c0_i32_1 = arith.constant 0 : i32
    return %c0_i32, %c0_i32_0 : i32, i32
  }
  func.func @transform_3(%arg0: i32) -> (i32, i32) {
    %c0_i32 = arith.constant 0 : i32
    %c0_i32_0 = arith.constant 0 : i32
    %c0_i32_1 = arith.constant 0 : i32
    return %c0_i32, %c0_i32_0 : i32, i32
  }
  func.func @transform_4(%arg0: i32) -> (i32, i32) {
    %c0_i32 = arith.constant 0 : i32
    %c0_i32_0 = arith.constant 0 : i32
    %c0_i32_1 = arith.constant 0 : i32
    return %c0_i32, %c0_i32_0 : i32, i32
  }
  func.func @transform_5(%arg0: i32) -> (i32, i32, i32, i32) {
    %c0_i32 = arith.constant 0 : i32
    %c0_i32_0 = arith.constant 0 : i32
    %c0_i32_1 = arith.constant 0 : i32
    %c0_i32_2 = arith.constant 0 : i32
    return %arg0, %c0_i32, %c0_i32_0, %c0_i32_1 : i32, i32, i32, i32
  }
}

</mosaic_0001>

<llo_original>
// kernel: recurrent_upconv_forward.1
$region0: #{recurrent_upconv_forward.1}
  #allocation0 [shape = 'u32[]', space=smem, size = 0x4, offset = 0x4, fixed_abs, tag = 'smem constant byte address 0x4 - core index']
  #allocation1 [shape = 'u32[144,128]{1,0:T(1,128)}', space=vmem, size = 0x12000, scoped, tag = 'internal scratch']
  %s0 = inlined_call_operand.vmem [shape: bf16[2,16,64], index: 0, kind: input, shape index: {}]
  %s1 = inlined_call_operand.hbm [shape: bf16[192,384], index: 1, kind: input, shape index: {}]
  %s2 = inlined_call_operand.vmem [shape: f32[1,384], index: 2, kind: input, shape index: {}]
  %s3 = inlined_call_operand.vmem [shape: bf16[384,256], index: 3, kind: input, shape index: {}]
  %s4 = inlined_call_operand.vmem [shape: f32[1,256], index: 4, kind: input, shape index: {}]
  %s5 = inlined_call_operand.vmem [shape: f32[2,2,16,256], index: 5, kind: output, shape index: {}]
  %s6 = sld [smem:[#allocation0]]
  $region57: #{recurrent_upconv_forward.1} parent=0
    _
  %s8 = ssub.s32 1, %s6
  %s9 = scalar_select 0, %s8, %s6
  $region1: #{recurrent_upconv_forward.1} parent=0
    #allocation2 [shape = 'u8[147456]{0}', space=vmem, size = 0x24000, scoped, tag = 'input window, operand 1, single buffered']
    #allocation3 [shape = 's32[2]{0}', space=sflag, size = 0x8, scoped, tag = 'scoped memory for recurrent_upconv_forward.1']
    %10 = vsyncpa [#allocation3], 0
    loop: start=0, step=1, limit=4
    $region2: #{recurrent_upconv_forward.1} parent=1 // loop_pre_header
      _
    $region3: #{recurrent_upconv_forward.1} parent=1 // loop_header
      %s12 = sphi 0, %s16
      %p13 = scmp.ge.s32.totalorder %s12, 4
      %s22 = sphi 0, %s24
      %s25 = sphi 0, %s22
      %s26 = sphi 0, %s25
      %s42 = sphi 0, %s26
      %s46 = sphi 0, %s46
      %s48 = sphi 0, %s46
      %s49 = sphi 0, %s48
      %s63 = sphi 0, %s49
      %s67 = sphi 0, %s67
      %s69 = sphi 0, %s67
      %s70 = sphi 0, %s69
      %s84 = sphi 0, %s70
      %s88 = sphi 0, %s88
      %s90 = sphi 0, %s88
      %s91 = sphi 0, %s90
      %s105 = sphi 0, %s91
      %s109 = sphi 0, %s109
      %s111 = sphi 0, %s109
      %s112 = sphi 0, %s111
      %s126 = sphi 0, %s112
      %s132 = sphi 0, %s134
      %s135 = sphi 0, %s132
      %s136 = sphi 0, %s135
      %s152 = sphi 0, %s136
    $region4: #{recurrent_upconv_forward.1} parent=1 // loop_header_branch
      %15 = sbr.rel (%p13) target = $region8
    $region5: #{recurrent_upconv_forward.1} parent=1 // loop_body
      %s17 = ssub.s32 %s12, 1
      %s18 = ssub.s32 %s12, 2
      %s19 = sadd.s32 %s12, 1
      %s20 = ssub.s32 %s12, %s19
      %p21 = scmp.eq.s32.totalorder %s20, 0
      %s23 = sadd.s32 %s22, 1
      %s24 = scalar_select %p21, %s22, %s23
      %p27 = pneg %p21
      %p28 = scmp.eq.s32.totalorder %s12, 1
      %p29 = por %p27, %p28
      %p30 = scmp.ne.s32.totalorder %s22, %s25
      %p31 = scmp.eq.s32.totalorder %s12, 0
      %p32 = por %p30, %p31
      %p33 = scmp.ne.s32.totalorder %s22, %s25
      %p34 = scmp.eq.s32.totalorder %s17, 1
      %p35 = por %p33, %p34
      %p36 = scmp.ne.s32.totalorder %s25, %s26
      %p37 = scmp.eq.s32.totalorder %s17, 0
      %p38 = por %p36, %p37
      %p39 = scmp.ne.s32.totalorder %s25, %s26
      %p40 = scmp.eq.s32.totalorder %s18, 1
      %p41 = por %p39, %p40
      %p43 = scmp.ne.s32.totalorder %s26, %s42
      %p44 = scmp.eq.s32.totalorder %s18, 0
      %p45 = por %p43, %p44
      %s47 = sadd.s32 %s46, 1
      %p50 = scmp.eq.s32.totalorder %s12, 1
      %p51 = scmp.ne.s32.totalorder %s46, %s48
      %p52 = scmp.eq.s32.totalorder %s12, 0
      %p53 = por %p51, %p52
      %p54 = scmp.ne.s32.totalorder %s46, %s48
      %p55 = scmp.eq.s32.totalorder %s17, 1
      %p56 = por %p54, %p55
      %p57 = scmp.ne.s32.totalorder %s48, %s49
      %p58 = scmp.eq.s32.totalorder %s17, 0
      %p59 = por %p57, %p58
      %p60 = scmp.ne.s32.totalorder %s48, %s49
      %p61 = scmp.eq.s32.totalorder %s18, 1
      %p62 = por %p60, %p61
      %p64 = scmp.ne.s32.totalorder %s49, %s63
      %p65 = scmp.eq.s32.totalorder %s18, 0
      %p66 = por %p64, %p65
      %s68 = sadd.s32 %s67, 1
      %p71 = scmp.eq.s32.totalorder %s12, 1
      %p72 = scmp.ne.s32.totalorder %s67, %s69
      %p73 = scmp.eq.s32.totalorder %s12, 0
      %p74 = por %p72, %p73
      %p75 = scmp.ne.s32.totalorder %s67, %s69
      %p76 = scmp.eq.s32.totalorder %s17, 1
      %p77 = por %p75, %p76
      %p78 = scmp.ne.s32.totalorder %s69, %s70
      %p79 = scmp.eq.s32.totalorder %s17, 0
      %p80 = por %p78, %p79
      %p81 = scmp.ne.s32.totalorder %s69, %s70
      %p82 = scmp.eq.s32.totalorder %s18, 1
      %p83 = por %p81, %p82
      %p85 = scmp.ne.s32.totalorder %s70, %s84
      %p86 = scmp.eq.s32.totalorder %s18, 0
      %p87 = por %p85, %p86
      %s89 = sadd.s32 %s88, 1
      %p92 = scmp.eq.s32.totalorder %s12, 1
      %p93 = scmp.ne.s32.totalorder %s88, %s90
      %p94 = scmp.eq.s32.totalorder %s12, 0
      %p95 = por %p93, %p94
      %p96 = scmp.ne.s32.totalorder %s88, %s90
      %p97 = scmp.eq.s32.totalorder %s17, 1
      %p98 = por %p96, %p97
      %p99 = scmp.ne.s32.totalorder %s90, %s91
      %p100 = scmp.eq.s32.totalorder %s17, 0
      %p101 = por %p99, %p100
      %p102 = scmp.ne.s32.totalorder %s90, %s91
      %p103 = scmp.eq.s32.totalorder %s18, 1
      %p104 = por %p102, %p103
      %p106 = scmp.ne.s32.totalorder %s91, %s105
      %p107 = scmp.eq.s32.totalorder %s18, 0
      %p108 = por %p106, %p107
      %s110 = sadd.s32 %s109, 1
      %p113 = scmp.eq.s32.totalorder %s12, 1
      %p114 = scmp.ne.s32.totalorder %s109, %s111
      %p115 = scmp.eq.s32.totalorder %s12, 0
      %p116 = por %p114, %p115
      %p117 = scmp.ne.s32.totalorder %s109, %s111
      %p118 = scmp.eq.s32.totalorder %s17, 1
      %p119 = por %p117, %p118
      %p120 = scmp.ne.s32.totalorder %s111, %s112
      %p121 = scmp.eq.s32.totalorder %s17, 0
      %p122 = por %p120, %p121
      %p123 = scmp.ne.s32.totalorder %s111, %s112
      %p124 = scmp.eq.s32.totalorder %s18, 1
      %p125 = por %p123, %p124
      %p127 = scmp.ne.s32.totalorder %s112, %s126
      %p128 = scmp.eq.s32.totalorder %s18, 0
      %p129 = por %p127, %p128
      %s130 = ssub.s32 %s12, %s19
      %p131 = scmp.eq.s32.totalorder %s130, 0
      %s133 = sadd.s32 %s132, 1
      %s134 = scalar_select %p131, %s132, %s133
      %p137 = pneg %p131
      %p138 = scmp.eq.s32.totalorder %s12, 1
      %p139 = por %p137, %p138
      %p140 = scmp.ne.s32.totalorder %s132, %s135
      %p141 = scmp.eq.s32.totalorder %s12, 0
      %p142 = por %p140, %p141
      %p143 = scmp.ne.s32.totalorder %s132, %s135
      %p144 = scmp.eq.s32.totalorder %s17, 1
      %p145 = por %p143, %p144
      %p146 = scmp.ne.s32.totalorder %s135, %s136
      %p147 = scmp.eq.s32.totalorder %s17, 0
      %p148 = por %p146, %p147
      %p149 = scmp.ne.s32.totalorder %s135, %s136
      %p150 = scmp.eq.s32.totalorder %s18, 1
      %p151 = por %p149, %p150
      %p153 = scmp.ne.s32.totalorder %s136, %s152
      %p154 = scmp.eq.s32.totalorder %s18, 0
      %p155 = por %p153, %p154
      %p156 = scmp.le.s32.totalorder 1, %s12
      %p157 = scmp.lt.s32.totalorder %s12, 3
      %p158 = pnand %p156, %p157
      %p159 = pneg %p158
      // Predicated region
      $region9: #{recurrent_upconv_forward.1} parent=5 // pred_check
        _
      $region10: #{recurrent_upconv_forward.1} parent=5 // pred_check_branch
        %161 = sbr.rel (%p158) target = $region12
      $region11: #{recurrent_upconv_forward.1} parent=5 // pred_region
        %s162 = ssub.s32 %s12, 1
        // Predicated region
        $region13: #{recurrent_upconv_forward.1} parent=11 // pred_check
          %p163 = pneg %p59
        $region14: #{recurrent_upconv_forward.1} parent=11 // pred_check_branch
          %165 = sbr.rel (%p163) target = $region16
        $region15: #{recurrent_upconv_forward.1} parent=11 // pred_region
          %s167 = ssub.s32 4608, 4608
          %168 = vsyncadd [#allocation3], %s167
          %s169 = sshll.u32 [#allocation2], 4
          %s170 = int_to_ptr.vmem [resolvable:$true] %s169
          %175 = dma.hbm_to_vmem [thread:$0]  %s1, 4608, %s170, [#allocation3], 192, 192, 12
        $region16: #{recurrent_upconv_forward.1} parent=11 // pred_fallthru
          _
        // Predicated region
        $region17: #{recurrent_upconv_forward.1} parent=11 // pred_check
          %p176 = pneg %p80
        $region18: #{recurrent_upconv_forward.1} parent=11 // pred_check_branch
          %178 = sbr.rel (%p176) target = $region20
        $region19: #{recurrent_upconv_forward.1} parent=11 // pred_region
          _
        $region20: #{recurrent_upconv_forward.1} parent=11 // pred_fallthru
          _
        // Predicated region
        $region21: #{recurrent_upconv_forward.1} parent=11 // pred_check
          %p179 = pneg %p101
        $region22: #{recurrent_upconv_forward.1} parent=11 // pred_check_branch
          %181 = sbr.rel (%p179) target = $region24
        $region23: #{recurrent_upconv_forward.1} parent=11 // pred_region
          _
        $region24: #{recurrent_upconv_forward.1} parent=11 // pred_fallthru
          _
        // Predicated region
        $region25: #{recurrent_upconv_forward.1} parent=11 // pred_check
          %p182 = pneg %p122
        $region26: #{recurrent_upconv_forward.1} parent=11 // pred_check_branch
          %184 = sbr.rel (%p182) target = $region28
        $region27: #{recurrent_upconv_forward.1} parent=11 // pred_region
          _
        $region28: #{recurrent_upconv_forward.1} parent=11 // pred_fallthru
          _
      $region12: #{recurrent_upconv_forward.1} parent=5 // pred_fallthru
        _
      %p185 = scmp.lt.s32.totalorder %s12, 2
      // Predicated region
      $region29: #{recurrent_upconv_forward.1} parent=5 // pred_check
        %p186 = pneg %p185
      $region30: #{recurrent_upconv_forward.1} parent=5 // pred_check_branch
        %188 = sbr.rel (%p186) target = $region32
      $region31: #{recurrent_upconv_forward.1} parent=5 // pred_region
        // Predicated region
        $region33: #{recurrent_upconv_forward.1} parent=31 // pred_check
          %p189 = pneg %p32
        $region34: #{recurrent_upconv_forward.1} parent=31 // pred_check_branch
          %191 = sbr.rel (%p189) target = $region36
        $region35: #{recurrent_upconv_forward.1} parent=31 // pred_region
          %p192 = scmp.lt.s32.totalorder %s12, 1
          %s193 = scalar_select %p192, %s12, 1
          %s194 = smul.addr %s193, 2
          %s195 = smul.addr %s194, 4
          %s196 = scalar_lea.vmem %s0, %s195
        $region36: #{recurrent_upconv_forward.1} parent=31 // pred_fallthru
          _
      $region32: #{recurrent_upconv_forward.1} parent=5 // pred_fallthru
        _
      %p197 = scmp.le.s32.totalorder 1, %s12
      %p198 = scmp.lt.s32.totalorder %s12, 3
      %p199 = pnand %p197, %p198
      %p200 = pneg %p199
      // Predicated region
      $region37: #{recurrent_upconv_forward.1} parent=5 // pred_check
        _
      $region38: #{recurrent_upconv_forward.1} parent=5 // pred_check_branch
        %202 = sbr.rel (%p199) target = $region40
      $region39: #{recurrent_upconv_forward.1} parent=5 // pred_region
        %s203 = ssub.s32 %s12, 1
        // Predicated region
        $region41: #{recurrent_upconv_forward.1} parent=39 // pred_check
          %p204 = pneg %p59
        $region42: #{recurrent_upconv_forward.1} parent=39 // pred_check_branch
          %206 = sbr.rel (%p204) target = $region44
        $region43: #{recurrent_upconv_forward.1} parent=39 // pred_region
          %207 = dma.done [#allocation3], 4608
        $region44: #{recurrent_upconv_forward.1} parent=39 // pred_fallthru
          _
        %p208 = scmp.lt.s32.totalorder %s17, 1
        %s209 = scalar_select %p208, %s17, 1
        %s210 = smul.addr %s209, 2
        %s211 = smul.addr %s210, 4
        %s212 = scalar_lea.vmem %s0, %s211
        %p213 = pneg %p38
        %p214 = pneg %p35
        %p215 = pneg %p59
        %p216 = pneg %p56
        %p217 = pneg %p80
        %p218 = pneg %p77
        %p219 = pneg %p101
        %p220 = pneg %p98
        %p221 = pneg %p122
        %p222 = pneg %p119
        %p223 = pneg %p148
        %p224 = pneg %p145
        %p225 = scmp.lt.s32.totalorder %s17, 1
        %s226 = scalar_select %p225, %s17, 1
        %s227 = smul.addr %s226, 8
        %s228 = smul.addr %s227, 8
        %s229 = scalar_lea.vmem %s5, %s228
        %p230 = scmp.lt.s32.totalorder %s17, 1
        %s231 = scalar_select %p230, %s17, 1
        %s232 = smul.addr %s231, 2
        %s233 = smul.addr %s232, 4
        %s234 = scalar_lea.vmem %s0, %s233
        %p235 = scmp.lt.s32.totalorder %s17, 1
        %s236 = scalar_select %p235, %s17, 1
        %s237 = smul.addr %s236, 8
        %s238 = smul.addr %s237, 8
        %s239 = scalar_lea.vmem %s5, %s238
        %v241 = vld [vmem:[%s234] sm:$0xf]
        %v242 = vld [vmem:[%s234 + $0x4] sm:$0xf]
        %v245 = vunpack.c.l.b16 %v241
        %v246 = vunpack.c.l.b16 %v242
        %v247 = vpack.c.b16 %v246, %v245
        %v249 = vshrl.u32 %v247, 16
        %v251 = vrot.slane %v249, 7
        %v252 = vshll.u32 %v247, 16
        %v254 = vor.u32 %v251, %v252
        %vm256 = vcmask 1040384
        %vm257 = vsmask.f32 256
        %vm258 = vmand %vm256, %vm257
        %v259 = vsel %vm258, 0, %v254
        %v260 = vrot.slane %v252, 1
        %v261 = vor.u32 %v249, %v260
        %vm263 = vcmask 1047552
        %vm264 = vsmask.f32 7424
        %vm265 = vmand %vm263, %vm264
        %v266 = vsel %vm265, %v261, 0
        %267 = vrot.lane.b32.xlu0 %v247, 64
        %v268 = vpop.permute.xlu0 %267
        %vm269 = vcmask 523264
        %v272 = vsel %vm269, %v259, %v268
        %v274 = vld [vmem:[#allocation2] sm:$0xff]
        %v275 = vld [vmem:[#allocation2 + $0x8] sm:$0xf]
        %v276 = vld [vmem:[#allocation2 + $0xc] sm:$0xff]
        %v277 = vld [vmem:[#allocation2 + $0x14] sm:$0xf]
        %v278 = vld [vmem:[#allocation2 + $0x18] sm:$0xff]
        %v279 = vld [vmem:[#allocation2 + $0x20] sm:$0xf]
        %v280 = vld [vmem:[#allocation2 + $0x24] sm:$0xff]
        %v281 = vld [vmem:[#allocation2 + $0x2c] sm:$0xf]
        %v282 = vld [vmem:[#allocation2 + $0x30] sm:$0xff]
        %v283 = vld [vmem:[#allocation2 + $0x38] sm:$0xf]
        %v284 = vld [vmem:[#allocation2 + $0x3c] sm:$0xff]
        %v285 = vld [vmem:[#allocation2 + $0x44] sm:$0xf]
        %v286 = vld [vmem:[#allocation2 + $0x48] sm:$0xff]
        %v287 = vld [vmem:[#allocation2 + $0x50] sm:$0xf]
        %v288 = vld [vmem:[#allocation2 + $0x54] sm:$0xff]
        %v289 = vld [vmem:[#allocation2 + $0x5c] sm:$0xf]
        %v290 = vld [vmem:[#allocation2 + $0x60] sm:$0xff]
        %v291 = vld [vmem:[#allocation2 + $0x68] sm:$0xf]
        %v292 = vld [vmem:[#allocation2 + $0x6c] sm:$0xff]
        %v293 = vld [vmem:[#allocation2 + $0x74] sm:$0xf]
        %v294 = vld [vmem:[#allocation2 + $0x78] sm:$0xff]
        %v295 = vld [vmem:[#allocation2 + $0x80] sm:$0xf]
        %v296 = vld [vmem:[#allocation2 + $0x84] sm:$0xff]
        %v297 = vld [vmem:[#allocation2 + $0x8c] sm:$0xf]
        %v298 = vld [vmem:[#allocation2 + $0x90] sm:$0xff]
        %v299 = vld [vmem:[#allocation2 + $0x98] sm:$0xf]
        %v300 = vld [vmem:[#allocation2 + $0x9c] sm:$0xff]
        %v301 = vld [vmem:[#allocation2 + $0xa4] sm:$0xf]
        %v302 = vld [vmem:[#allocation2 + $0xa8] sm:$0xff]
        %v303 = vld [vmem:[#allocation2 + $0xb0] sm:$0xf]
        %v304 = vld [vmem:[#allocation2 + $0xb4] sm:$0xff]
        %v305 = vld [vmem:[#allocation2 + $0xbc] sm:$0xf]
        %v306 = vld [vmem:[#allocation2 + $0xc0] sm:$0xff]
        %v307 = vld [vmem:[#allocation2 + $0xc8] sm:$0xf]
        %v308 = vld [vmem:[#allocation2 + $0xcc] sm:$0xff]
        %v309 = vld [vmem:[#allocation2 + $0xd4] sm:$0xf]
        %v310 = vld [vmem:[#allocation2 + $0xd8] sm:$0xff]
        %v311 = vld [vmem:[#allocation2 + $0xe0] sm:$0xf]
        %v312 = vld [vmem:[#allocation2 + $0xe4] sm:$0xff]
        %v313 = vld [vmem:[#allocation2 + $0xec] sm:$0xf]
        %v314 = vld [vmem:[#allocation2 + $0xf0] sm:$0xff]
        %v315 = vld [vmem:[#allocation2 + $0xf8] sm:$0xf]
        %v316 = vld [vmem:[#allocation2 + $0xfc] sm:$0xff]
        %v317 = vld [vmem:[#allocation2 + $0x104] sm:$0xf]
        %v318 = vld [vmem:[#allocation2 + $0x108] sm:$0xff]
        %v319 = vld [vmem:[#allocation2 + $0x110] sm:$0xf]
        %v320 = vld [vmem:[#allocation2 + $0x114] sm:$0xff]
        %v321 = vld [vmem:[#allocation2 + $0x11c] sm:$0xf]
        %v322 = vld [vmem:[%s2] sm:$0x7]
        %v324 = vlaneseq
        %v325 = vshrl.u32 %v324, 7
        %v326 = vsub.s32 0, %v325
        %v327 = vrot.slane %v322, %v326
        %v328 = vlaneseq
        %v329 = vshrl.u32 %v328, 7
        %v330 = vsub.s32 1, %v329
        %v331 = vrot.slane %v322, %v330
        %v332 = vlaneseq
        %v333 = vshrl.u32 %v332, 7
        %v334 = vsub.s32 2, %v333
        %v335 = vrot.slane %v322, %v334
        %v387 = vunpack.c.l.b16 %v274
        %v388 = vunpack.c.h.b16 %v274
        %v389 = vunpack.c.l.b16 %v275
        %v390 = vunpack.c.l.b16 %v276
        %v391 = vunpack.c.h.b16 %v276
        %v392 = vunpack.c.l.b16 %v277
        %v393 = vunpack.c.l.b16 %v278
        %v394 = vunpack.c.h.b16 %v278
        %v395 = vunpack.c.l.b16 %v279
        %v396 = vunpack.c.l.b16 %v280
        %v397 = vunpack.c.h.b16 %v280
        %v398 = vunpack.c.l.b16 %v281
        %v399 = vunpack.c.l.b16 %v282
        %v400 = vunpack.c.h.b16 %v282
        %v401 = vunpack.c.l.b16 %v283
        %v402 = vunpack.c.l.b16 %v284
        %v403 = vunpack.c.h.b16 %v284
        %v404 = vunpack.c.l.b16 %v285
        %v405 = vunpack.c.l.b16 %v286
        %v406 = vunpack.c.h.b16 %v286
        %v407 = vunpack.c.l.b16 %v287
        %v408 = vunpack.c.l.b16 %v288
        %v409 = vunpack.c.h.b16 %v288
        %v410 = vunpack.c.l.b16 %v289
        %v411 = vunpack.c.l.b16 %v290
        %v412 = vunpack.c.h.b16 %v290
        %v413 = vunpack.c.l.b16 %v291
        %v414 = vunpack.c.l.b16 %v292
        %v415 = vunpack.c.h.b16 %v292
        %v416 = vunpack.c.l.b16 %v293
        %v417 = vunpack.c.l.b16 %v294
        %v418 = vunpack.c.h.b16 %v294
        %v419 = vunpack.c.l.b16 %v295
        %v420 = vunpack.c.l.b16 %v296
        %v421 = vunpack.c.h.b16 %v296
        %v422 = vunpack.c.l.b16 %v297
        %v423 = vunpack.c.l.b16 %v298
        %v424 = vunpack.c.h.b16 %v298
        %v425 = vunpack.c.l.b16 %v299
        %v426 = vunpack.c.l.b16 %v300
        %v427 = vunpack.c.h.b16 %v300
        %v428 = vunpack.c.l.b16 %v301
        %v429 = vunpack.c.l.b16 %v302
        %v430 = vunpack.c.h.b16 %v302
        %v431 = vunpack.c.l.b16 %v303
        %v432 = vunpack.c.l.b16 %v304
        %v433 = vunpack.c.h.b16 %v304
        %v434 = vunpack.c.l.b16 %v305
        %v435 = vunpack.c.l.b16 %v306
        %v436 = vunpack.c.h.b16 %v306
        %v437 = vunpack.c.l.b16 %v307
        %v438 = vunpack.c.l.b16 %v308
        %v439 = vunpack.c.h.b16 %v308
        %v440 = vunpack.c.l.b16 %v309
        %v441 = vunpack.c.l.b16 %v310
        %v442 = vunpack.c.h.b16 %v310
        %v443 = vunpack.c.l.b16 %v311
        %v444 = vunpack.c.l.b16 %v312
        %v445 = vunpack.c.h.b16 %v312
        %v446 = vunpack.c.l.b16 %v313
        %v447 = vunpack.c.l.b16 %v314
        %v448 = vunpack.c.h.b16 %v314
        %v449 = vunpack.c.l.b16 %v315
        %v450 = vunpack.c.l.b16 %v316
        %v451 = vunpack.c.h.b16 %v316
        %v452 = vunpack.c.l.b16 %v317
        %v453 = vunpack.c.l.b16 %v318
        %v454 = vunpack.c.h.b16 %v318
        %v455 = vunpack.c.l.b16 %v319
        %v456 = vunpack.c.l.b16 %v320
        %v457 = vunpack.c.h.b16 %v320
        %v458 = vunpack.c.l.b16 %v321
        %v459 = vpack.c.b16 %v390, %v387
        %v460 = vpack.c.b16 %v391, %v388
        %v461 = vpack.c.b16 %v392, %v389
        %v462 = vpack.c.b16 %v396, %v393
        %v463 = vpack.c.b16 %v397, %v394
        %v464 = vpack.c.b16 %v398, %v395
        %v465 = vpack.c.b16 %v402, %v399
        %v466 = vpack.c.b16 %v403, %v400
        %v467 = vpack.c.b16 %v404, %v401
        %v468 = vpack.c.b16 %v408, %v405
        %v469 = vpack.c.b16 %v409, %v406
        %v470 = vpack.c.b16 %v410, %v407
        %v471 = vpack.c.b16 %v414, %v411
        %v472 = vpack.c.b16 %v415, %v412
        %v473 = vpack.c.b16 %v416, %v413
        %v474 = vpack.c.b16 %v420, %v417
        %v475 = vpack.c.b16 %v421, %v418
        %v476 = vpack.c.b16 %v422, %v419
        %v477 = vpack.c.b16 %v426, %v423
        %v478 = vpack.c.b16 %v427, %v424
        %v479 = vpack.c.b16 %v428, %v425
        %v480 = vpack.c.b16 %v432, %v429
        %v481 = vpack.c.b16 %v433, %v430
        %v482 = vpack.c.b16 %v434, %v431
        %v483 = vpack.c.b16 %v438, %v435
        %v484 = vpack.c.b16 %v439, %v436
        %v485 = vpack.c.b16 %v440, %v437
        %v486 = vpack.c.b16 %v444, %v441
        %v487 = vpack.c.b16 %v445, %v442
        %v488 = vpack.c.b16 %v446, %v443
        %v489 = vpack.c.b16 %v450, %v447
        %v490 = vpack.c.b16 %v451, %v448
        %v491 = vpack.c.b16 %v452, %v449
        %v492 = vpack.c.b16 %v456, %v453
        %v493 = vpack.c.b16 %v457, %v454
        %v494 = vpack.c.b16 %v458, %v455
        %v532 = vsel %vm269, %v266, 0
        %534 = vmatprep.subr.bf16.mxu0 %v460
        %535 = vmatpush1.bf16.msra.mxu0 %v459
        %536 = vmatprep.subr.bf16.mxu0 %v463
        %537 = vmatpush1.bf16.msra.mxu0 %v462
        %538 = vmatprep.subr.bf16.mxu0 %v466
        %539 = vmatpush1.bf16.msra.mxu0 %v465
        %540 = vmatprep.subr.bf16.mxu0 %v469
        %541 = vmatpush1.bf16.msra.mxu0 %v468
        %542 = vmatprep.subr.bf16.mxu0 %v472
        %543 = vmatpush1.bf16.msra.mxu0 %v471
        %544 = vmatprep.subr.bf16.mxu0 %v475
        %545 = vmatpush1.bf16.msra.mxu0 %v474
        %546 = vmatprep.subr.bf16.mxu0 %v478
        %547 = vmatpush1.bf16.msra.mxu0 %v477
        %548 = vmatprep.subr.bf16.mxu0 %v481
        %549 = vmatpush1.bf16.msra.mxu0 %v480
        %550 = vmatprep.subr.bf16.mxu0 %v484
        %551 = vmatpush1.bf16.msra.mxu0 %v483
        %552 = vmatprep.subr.bf16.mxu0 %v487
        %553 = vmatpush1.bf16.msra.mxu0 %v486
        %554 = vmatprep.subr.bf16.mxu0 %v490
        %555 = vmatpush1.bf16.msra.mxu0 %v489
        %556 = vmatprep.subr.bf16.mxu0 %v493
        %557 = vmatpush1.bf16.msra.mxu0 %v492
        %558 = vmatprep.subr.bf16.mxu0 0
        %559 = vmatpush1.bf16.msra.mxu0 0
        %560 = vmatprep.subr.bf16.mxu0 0
        %561 = vmatpush1.bf16.msra.mxu0 0
        %562 = vmatprep.subr.bf16.mxu0 0
        %563 = vmatpush1.bf16.msra.mxu0 0
        %564 = vmatprep.subr.bf16.mxu0 0
        %565 = vmatpush1.bf16.msra.mxu0 0
        %566 = vmatprep.mubr.bf16.mxu0 %v532
        %567 = vmatmul.mubr.bf16.gmra.mrb[0].mxu0 %v272
        %v568 = vpop.f32.mrb[0].mxu0
        %v569 = vadd.f32 %v327, %v568
        %v570 = vpop.f32.mrb[0].mxu0
        %v571 = vadd.f32 %v331, %v570
        %v572 = vpop.f32.mrb[0].mxu0
        %v573 = vadd.f32 %v327, %v572
        %v574 = vpop.f32.mrb[0].mxu0
        %v575 = vadd.f32 %v331, %v574
        %576 = vdwg.mxu0
        %577 = vmatprep.subr.bf16.mxu0 0
        %578 = vmatpush1.bf16.msra.mxu0 %v461
        %579 = vmatprep.subr.bf16.mxu0 0
        %580 = vmatpush1.bf16.msra.mxu0 %v464
        %581 = vmatprep.subr.bf16.mxu0 0
        %582 = vmatpush1.bf16.msra.mxu0 %v467
        %583 = vmatprep.subr.bf16.mxu0 0
        %584 = vmatpush1.bf16.msra.mxu0 %v470
        %585 = vmatprep.subr.bf16.mxu0 0
        %586 = vmatpush1.bf16.msra.mxu0 %v473
        %587 = vmatprep.subr.bf16.mxu0 0
        %588 = vmatpush1.bf16.msra.mxu0 %v476
        %589 = vmatprep.subr.bf16.mxu0 0
        %590 = vmatpush1.bf16.msra.mxu0 %v479
        %591 = vmatprep.subr.bf16.mxu0 0
        %592 = vmatpush1.bf16.msra.mxu0 %v482
        %593 = vmatprep.subr.bf16.mxu0 0
        %594 = vmatpush1.bf16.msra.mxu0 %v485
        %595 = vmatprep.subr.bf16.mxu0 0
        %596 = vmatpush1.bf16.msra.mxu0 %v488
        %597 = vmatprep.subr.bf16.mxu0 0
        %598 = vmatpush1.bf16.msra.mxu0 %v491
        %599 = vmatprep.subr.bf16.mxu0 0
        %600 = vmatpush1.bf16.msra.mxu0 %v494
        %601 = vmatprep.subr.bf16.mxu0 0
        %602 = vmatpush1.bf16.msra.mxu0 0
        %603 = vmatprep.subr.bf16.mxu0 0
        %604 = vmatpush1.bf16.msra.mxu0 0
        %605 = vmatprep.subr.bf16.mxu0 0
        %606 = vmatpush1.bf16.msra.mxu0 0
        %607 = vmatprep.subr.bf16.mxu0 0
        %608 = vmatpush1.bf16.msra.mxu0 0
        %609 = vmatprep.mubr.bf16.mxu0 %v532
        %610 = vmatmul.mubr.bf16.gmra.mrb[0].mxu0 %v272
        %v611 = vpop.f32.mrb[0].mxu0
        %v612 = vadd.f32 %v335, %v611
        %v613 = vpop.f32.mrb[0].mxu0
        %v614 = vpop.f32.mrb[0].mxu0
        %v615 = vadd.f32 %v335, %v614
        %v616 = vpop.f32.mrb[0].mxu0
        %617 = vdwg.mxu0
        %v618 = vxor.u32 %v569, 2147483648
        %v619 = vxor.u32 %v573, 2147483648
        %v620 = vmul.f32 %v618, 1.442695
        %v621 = vpow.pop %v620
        %v622 = vmul.f32 %v619, 1.442695
        %v623 = vpow.pop %v622
        %v624 = vadd.f32 %v621, 1.0
        %v625 = vadd.f32 %v623, 1.0
        %v626 = vrcp.pop %v624
        %v627 = vmul.f32 1.0, %v626
        %v628 = vrcp.pop %v625
        %v629 = vmul.f32 1.0, %v628
        %v630 = vxor.u32 %v571, 2147483648
        %v631 = vxor.u32 %v575, 2147483648
        %v632 = vmul.f32 %v630, 1.442695
        %v633 = vpow.pop %v632
        %v634 = vmul.f32 %v631, 1.442695
        %v635 = vpow.pop %v634
        %v636 = vadd.f32 %v633, 1.0
        %v637 = vadd.f32 %v635, 1.0
        %v638 = vrcp.pop %v636
        %v639 = vmul.f32 1.0, %v638
        %v640 = vrcp.pop %v637
        %v641 = vmul.f32 1.0, %v640
        %v642 = vtanh.pop %v612
        %v643 = vtanh.pop %v615
        %v644 = vmul.f32 %v627, %v642
        %v645 = vmul.f32 %v629, %v643
        %v646 = vtanh.pop %v644
        %v647 = vtanh.pop %v645
        %v648 = vmul.f32 %v639, %v646
        %v649 = vmul.f32 %v641, %v647
        %vm652 = vcmask 1040384
        %v653 = vrot.slane %v648, 7
        %v654 = vrot.slane %v649, 7
        %v655 = vsel %vm652, %v653, %v654
        %v658 = vsel %vm652, %v648, %v653
        %vm659 = vcmask 1046528
        %v660 = vrot.slane %v648, 1
        %v661 = vrot.slane %v649, 1
        %v662 = vsel %vm659, %v660, %v661
        %v665 = vsel %vm659, %v661, %v649
        %v666 = vmul.f32 %v658, 0.25
        %v667 = vmul.f32 %v655, 0.25
        %v668 = vmul.f32 %v648, 0.75
        %v669 = vmul.f32 %v649, 0.75
        %v670 = vadd.f32 %v666, %v668
        %v671 = vadd.f32 %v667, %v669
        %v672 = vpack.c.bf16 %v671, %v670
        %v673 = vmul.f32 %v662, 0.25
        %v674 = vmul.f32 %v665, 0.25
        %v675 = vadd.f32 %v668, %v673
        %v676 = vadd.f32 %v669, %v674
        %v677 = vpack.c.bf16 %v676, %v675
        %v679 = vshrl.u32 %v677, 16
        %v681 = vrot.slane %v679, 7
        %v682 = vshll.u32 %v677, 16
        %v684 = vor.u32 %v681, %v682
        %v686 = vsel %vm258, 0, %v684
        %v688 = vshrl.u32 %v672, 16
        %v690 = vshll.u32 %v672, 16
        %v692 = vrot.slane %v690, 1
        %v693 = vor.u32 %v688, %v692
        %v695 = vsel %vm265, %v693, 0
        %v696 = vld [vmem:[%s3] sm:$0xff]
        %v697 = vld [vmem:[%s3 + $0x8] sm:$0xff]
        %v698 = vld [vmem:[%s3 + $0x10] sm:$0xff]
        %v699 = vld [vmem:[%s3 + $0x18] sm:$0xff]
        %v700 = vld [vmem:[%s3 + $0x20] sm:$0xff]
        %v701 = vld [vmem:[%s3 + $0x28] sm:$0xff]
        %v702 = vld [vmem:[%s3 + $0x30] sm:$0xff]
        %v703 = vld [vmem:[%s3 + $0x38] sm:$0xff]
        %v704 = vld [vmem:[%s3 + $0x40] sm:$0xff]
        %v705 = vld [vmem:[%s3 + $0x48] sm:$0xff]
        %v706 = vld [vmem:[%s3 + $0x50] sm:$0xff]
        %v707 = vld [vmem:[%s3 + $0x58] sm:$0xff]
        %v708 = vld [vmem:[%s3 + $0x60] sm:$0xff]
        %v709 = vld [vmem:[%s3 + $0x68] sm:$0xff]
        %v710 = vld [vmem:[%s3 + $0x70] sm:$0xff]
        %v711 = vld [vmem:[%s3 + $0x78] sm:$0xff]
        %v712 = vld [vmem:[%s3 + $0x80] sm:$0xff]
        %v713 = vld [vmem:[%s3 + $0x88] sm:$0xff]
        %v714 = vld [vmem:[%s3 + $0x90] sm:$0xff]
        %v715 = vld [vmem:[%s3 + $0x98] sm:$0xff]
        %v716 = vld [vmem:[%s3 + $0xa0] sm:$0xff]
        %v717 = vld [vmem:[%s3 + $0xa8] sm:$0xff]
        %v718 = vld [vmem:[%s3 + $0xb0] sm:$0xff]
        %v719 = vld [vmem:[%s3 + $0xb8] sm:$0xff]
        %v720 = vld [vmem:[%s3 + $0xc0] sm:$0xff]
        %v721 = vld [vmem:[%s3 + $0xc8] sm:$0xff]
        %v722 = vld [vmem:[%s3 + $0xd0] sm:$0xff]
        %v723 = vld [vmem:[%s3 + $0xd8] sm:$0xff]
        %v724 = vld [vmem:[%s3 + $0xe0] sm:$0xff]
        %v725 = vld [vmem:[%s3 + $0xe8] sm:$0xff]
        %v726 = vld [vmem:[%s3 + $0xf0] sm:$0xff]
        %v727 = vld [vmem:[%s3 + $0xf8] sm:$0xff]
        %v728 = vld [vmem:[%s3 + $0x100] sm:$0xff]
        %v729 = vld [vmem:[%s3 + $0x108] sm:$0xff]
        %v730 = vld [vmem:[%s3 + $0x110] sm:$0xff]
        %v731 = vld [vmem:[%s3 + $0x118] sm:$0xff]
        %v732 = vld [vmem:[%s3 + $0x120] sm:$0xff]
        %v733 = vld [vmem:[%s3 + $0x128] sm:$0xff]
        %v734 = vld [vmem:[%s3 + $0x130] sm:$0xff]
        %v735 = vld [vmem:[%s3 + $0x138] sm:$0xff]
        %v736 = vld [vmem:[%s3 + $0x140] sm:$0xff]
        %v737 = vld [vmem:[%s3 + $0x148] sm:$0xff]
        %v738 = vld [vmem:[%s3 + $0x150] sm:$0xff]
        %v739 = vld [vmem:[%s3 + $0x158] sm:$0xff]
        %v740 = vld [vmem:[%s3 + $0x160] sm:$0xff]
        %v741 = vld [vmem:[%s3 + $0x168] sm:$0xff]
        %v742 = vld [vmem:[%s3 + $0x170] sm:$0xff]
        %v743 = vld [vmem:[%s3 + $0x178] sm:$0xff]
        %v744 = vld [vmem:[%s4] sm:$0x3]
        %v746 = vlaneseq
        %v747 = vshrl.u32 %v746, 7
        %v748 = vsub.s32 0, %v747
        %v749 = vrot.slane %v744, %v748
        %v750 = vlaneseq
        %v751 = vshrl.u32 %v750, 7
        %v752 = vsub.s32 1, %v751
        %v753 = vrot.slane %v744, %v752
        %v804 = vunpack.c.l.b16 %v696
        %v805 = vunpack.c.h.b16 %v696
        %v806 = vunpack.c.l.b16 %v697
        %v807 = vunpack.c.h.b16 %v697
        %v808 = vunpack.c.l.b16 %v698
        %v809 = vunpack.c.h.b16 %v698
        %v810 = vunpack.c.l.b16 %v699
        %v811 = vunpack.c.h.b16 %v699
        %v812 = vunpack.c.l.b16 %v700
        %v813 = vunpack.c.h.b16 %v700
        %v814 = vunpack.c.l.b16 %v701
        %v815 = vunpack.c.h.b16 %v701
        %v816 = vunpack.c.l.b16 %v702
        %v817 = vunpack.c.h.b16 %v702
        %v818 = vunpack.c.l.b16 %v703
        %v819 = vunpack.c.h.b16 %v703
        %v820 = vunpack.c.l.b16 %v704
        %v821 = vunpack.c.h.b16 %v704
        %v822 = vunpack.c.l.b16 %v705
        %v823 = vunpack.c.h.b16 %v705
        %v824 = vunpack.c.l.b16 %v706
        %v825 = vunpack.c.h.b16 %v706
        %v826 = vunpack.c.l.b16 %v707
        %v827 = vunpack.c.h.b16 %v707
        %v828 = vunpack.c.l.b16 %v708
        %v829 = vunpack.c.h.b16 %v708
        %v830 = vunpack.c.l.b16 %v709
        %v831 = vunpack.c.h.b16 %v709
        %v832 = vunpack.c.l.b16 %v710
        %v833 = vunpack.c.h.b16 %v710
        %v834 = vunpack.c.l.b16 %v711
        %v835 = vunpack.c.h.b16 %v711
        %v836 = vunpack.c.l.b16 %v712
        %v837 = vunpack.c.h.b16 %v712
        %v838 = vunpack.c.l.b16 %v713
        %v839 = vunpack.c.h.b16 %v713
        %v840 = vunpack.c.l.b16 %v714
        %v841 = vunpack.c.h.b16 %v714
        %v842 = vunpack.c.l.b16 %v715
        %v843 = vunpack.c.h.b16 %v715
        %v844 = vunpack.c.l.b16 %v716
        %v845 = vunpack.c.h.b16 %v716
        %v846 = vunpack.c.l.b16 %v717
        %v847 = vunpack.c.h.b16 %v717
        %v848 = vunpack.c.l.b16 %v718
        %v849 = vunpack.c.h.b16 %v718
        %v850 = vunpack.c.l.b16 %v719
        %v851 = vunpack.c.h.b16 %v719
        %v852 = vunpack.c.l.b16 %v720
        %v853 = vunpack.c.h.b16 %v720
        %v854 = vunpack.c.l.b16 %v721
        %v855 = vunpack.c.h.b16 %v721
        %v856 = vunpack.c.l.b16 %v722
        %v857 = vunpack.c.h.b16 %v722
        %v858 = vunpack.c.l.b16 %v723
        %v859 = vunpack.c.h.b16 %v723
        %v860 = vunpack.c.l.b16 %v724
        %v861 = vunpack.c.h.b16 %v724
        %v862 = vunpack.c.l.b16 %v725
        %v863 = vunpack.c.h.b16 %v725
        %v864 = vunpack.c.l.b16 %v726
        %v865 = vunpack.c.h.b16 %v726
        %v866 = vunpack.c.l.b16 %v727
        %v867 = vunpack.c.h.b16 %v727
        %v868 = vunpack.c.l.b16 %v728
        %v869 = vunpack.c.h.b16 %v728
        %v870 = vunpack.c.l.b16 %v729
        %v871 = vunpack.c.h.b16 %v729
        %v872 = vunpack.c.l.b16 %v730
        %v873 = vunpack.c.h.b16 %v730
        %v874 = vunpack.c.l.b16 %v731
        %v875 = vunpack.c.h.b16 %v731
        %v876 = vunpack.c.l.b16 %v732
        %v877 = vunpack.c.h.b16 %v732
        %v878 = vunpack.c.l.b16 %v733
        %v879 = vunpack.c.h.b16 %v733
        %v880 = vunpack.c.l.b16 %v734
        %v881 = vunpack.c.h.b16 %v734
        %v882 = vunpack.c.l.b16 %v735
        %v883 = vunpack.c.h.b16 %v735
        %v884 = vunpack.c.l.b16 %v736
        %v885 = vunpack.c.h.b16 %v736
        %v886 = vunpack.c.l.b16 %v737
        %v887 = vunpack.c.h.b16 %v737
        %v888 = vunpack.c.l.b16 %v738
        %v889 = vunpack.c.h.b16 %v738
        %v890 = vunpack.c.l.b16 %v739
        %v891 = vunpack.c.h.b16 %v739
        %v892 = vunpack.c.l.b16 %v740
        %v893 = vunpack.c.h.b16 %v740
        %v894 = vunpack.c.l.b16 %v741
        %v895 = vunpack.c.h.b16 %v741
        %v896 = vunpack.c.l.b16 %v742
        %v897 = vunpack.c.h.b16 %v742
        %v898 = vunpack.c.l.b16 %v743
        %v899 = vunpack.c.h.b16 %v743
        %v900 = vpack.c.b16 %v806, %v804
        %v901 = vpack.c.b16 %v807, %v805
        %v902 = vpack.c.b16 %v810, %v808
        %v903 = vpack.c.b16 %v811, %v809
        %v904 = vpack.c.b16 %v814, %v812
        %v905 = vpack.c.b16 %v815, %v813
        %v906 = vpack.c.b16 %v818, %v816
        %v907 = vpack.c.b16 %v819, %v817
        %v908 = vpack.c.b16 %v822, %v820
        %v909 = vpack.c.b16 %v823, %v821
        %v910 = vpack.c.b16 %v826, %v824
        %v911 = vpack.c.b16 %v827, %v825
        %v912 = vpack.c.b16 %v830, %v828
        %v913 = vpack.c.b16 %v831, %v829
        %v914 = vpack.c.b16 %v834, %v832
        %v915 = vpack.c.b16 %v835, %v833
        %v916 = vpack.c.b16 %v838, %v836
        %v917 = vpack.c.b16 %v839, %v837
        %v918 = vpack.c.b16 %v842, %v840
        %v919 = vpack.c.b16 %v843, %v841
        %v920 = vpack.c.b16 %v846, %v844
        %v921 = vpack.c.b16 %v847, %v845
        %v922 = vpack.c.b16 %v850, %v848
        %v923 = vpack.c.b16 %v851, %v849
        %v924 = vpack.c.b16 %v854, %v852
        %v925 = vpack.c.b16 %v855, %v853
        %v926 = vpack.c.b16 %v858, %v856
        %v927 = vpack.c.b16 %v859, %v857
        %v928 = vpack.c.b16 %v862, %v860
        %v929 = vpack.c.b16 %v863, %v861
        %v930 = vpack.c.b16 %v866, %v864
        %v931 = vpack.c.b16 %v867, %v865
        %v932 = vpack.c.b16 %v870, %v868
        %v933 = vpack.c.b16 %v871, %v869
        %v934 = vpack.c.b16 %v874, %v872
        %v935 = vpack.c.b16 %v875, %v873
        %v936 = vpack.c.b16 %v878, %v876
        %v937 = vpack.c.b16 %v879, %v877
        %v938 = vpack.c.b16 %v882, %v880
        %v939 = vpack.c.b16 %v883, %v881
        %v940 = vpack.c.b16 %v886, %v884
        %v941 = vpack.c.b16 %v887, %v885
        %v942 = vpack.c.b16 %v890, %v888
        %v943 = vpack.c.b16 %v891, %v889
        %v944 = vpack.c.b16 %v894, %v892
        %v945 = vpack.c.b16 %v895, %v893
        %v946 = vpack.c.b16 %v898, %v896
        %v947 = vpack.c.b16 %v899, %v897
        %996 = vmatprep.subr.bf16.mxu0 %v901
        %997 = vmatpush1.bf16.msra.mxu0 %v900
        %998 = vmatprep.subr.bf16.mxu0 %v903
        %999 = vmatpush1.bf16.msra.mxu0 %v902
        %1000 = vmatprep.subr.bf16.mxu0 %v905
        %1001 = vmatpush1.bf16.msra.mxu0 %v904
        %1002 = vmatprep.subr.bf16.mxu0 %v907
        %1003 = vmatpush1.bf16.msra.mxu0 %v906
        %1004 = vmatprep.subr.bf16.mxu0 %v909
        %1005 = vmatpush1.bf16.msra.mxu0 %v908
        %1006 = vmatprep.subr.bf16.mxu0 %v911
        %1007 = vmatpush1.bf16.msra.mxu0 %v910
        %1008 = vmatprep.subr.bf16.mxu0 %v913
        %1009 = vmatpush1.bf16.msra.mxu0 %v912
        %1010 = vmatprep.subr.bf16.mxu0 %v915
        %1011 = vmatpush1.bf16.msra.mxu0 %v914
        %1012 = vmatprep.subr.bf16.mxu0 %v917
        %1013 = vmatpush1.bf16.msra.mxu0 %v916
        %1014 = vmatprep.subr.bf16.mxu0 %v919
        %1015 = vmatpush1.bf16.msra.mxu0 %v918
        %1016 = vmatprep.subr.bf16.mxu0 %v921
        %1017 = vmatpush1.bf16.msra.mxu0 %v920
        %1018 = vmatprep.subr.bf16.mxu0 %v923
        %1019 = vmatpush1.bf16.msra.mxu0 %v922
        %1020 = vmatprep.subr.bf16.mxu0 %v925
        %1021 = vmatpush1.bf16.msra.mxu0 %v924
        %1022 = vmatprep.subr.bf16.mxu0 %v927
        %1023 = vmatpush1.bf16.msra.mxu0 %v926
        %1024 = vmatprep.subr.bf16.mxu0 %v929
        %1025 = vmatpush1.bf16.msra.mxu0 %v928
        %1026 = vmatprep.subr.bf16.mxu0 %v931
        %1027 = vmatpush1.bf16.msra.mxu0 %v930
        %1028 = vmatprep.mubr.bf16.mxu0 %v672
        %1029 = vmatmul.mubr.bf16.gmra.mrb[0].mxu0 %v686
        %v1030 = vpop.f32.mrb[0].mxu0
        %v1031 = vadd.f32 %v749, %v1030
        %v1032 = vpop.f32.mrb[0].mxu0
        %v1033 = vadd.f32 %v753, %v1032
        %v1034 = vpop.f32.mrb[0].mxu0
        %v1035 = vadd.f32 %v749, %v1034
        %v1036 = vpop.f32.mrb[0].mxu0
        %v1037 = vadd.f32 %v753, %v1036
        %1038 = vmatprep.mubr.bf16.mxu0 %v677
        %1039 = vmatmul.mubr.bf16.gmra.mrb[0].mxu0 %v672
        %v1040 = vpop.f32.mrb[0].mxu0
        %v1041 = vadd.f32 %v749, %v1040
        %v1042 = vpop.f32.mrb[0].mxu0
        %v1043 = vadd.f32 %v753, %v1042
        %v1044 = vpop.f32.mrb[0].mxu0
        %v1045 = vadd.f32 %v749, %v1044
        %v1046 = vpop.f32.mrb[0].mxu0
        %v1047 = vadd.f32 %v753, %v1046
        %1048 = vdwg.mxu0
        %1049 = vmatprep.subr.bf16.mxu0 %v933
        %1050 = vmatpush1.bf16.msra.mxu0 %v932
        %1051 = vmatprep.subr.bf16.mxu0 %v935
        %1052 = vmatpush1.bf16.msra.mxu0 %v934
        %1053 = vmatprep.subr.bf16.mxu0 %v937
        %1054 = vmatpush1.bf16.msra.mxu0 %v936
        %1055 = vmatprep.subr.bf16.mxu0 %v939
        %1056 = vmatpush1.bf16.msra.mxu0 %v938
        %1057 = vmatprep.subr.bf16.mxu0 %v941
        %1058 = vmatpush1.bf16.msra.mxu0 %v940
        %1059 = vmatprep.subr.bf16.mxu0 %v943
        %1060 = vmatpush1.bf16.msra.mxu0 %v942
        %1061 = vmatprep.subr.bf16.mxu0 %v945
        %1062 = vmatpush1.bf16.msra.mxu0 %v944
        %1063 = vmatprep.subr.bf16.mxu0 %v947
        %1064 = vmatpush1.bf16.msra.mxu0 %v946
        %1065 = vmatprep.subr.bf16.mxu0 0
        %1066 = vmatpush1.bf16.msra.mxu0 0
        %1067 = vmatprep.subr.bf16.mxu0 0
        %1068 = vmatpush1.bf16.msra.mxu0 0
        %1069 = vmatprep.subr.bf16.mxu0 0
        %1070 = vmatpush1.bf16.msra.mxu0 0
        %1071 = vmatprep.subr.bf16.mxu0 0
        %1072 = vmatpush1.bf16.msra.mxu0 0
        %1073 = vmatprep.subr.bf16.mxu0 0
        %1074 = vmatpush1.bf16.msra.mxu0 0
        %1075 = vmatprep.subr.bf16.mxu0 0
        %1076 = vmatpush1.bf16.msra.mxu0 0
        %1077 = vmatprep.subr.bf16.mxu0 0
        %1078 = vmatpush1.bf16.msra.mxu0 0
        %1079 = vmatprep.subr.bf16.mxu0 0
        %1080 = vmatpush1.bf16.msra.mxu0 0
        %1081 = vmatprep.mubr.bf16.mxu0 0
        %1082 = vmatmul.mubr.bf16.gmra.mrb[0].mxu0 %v677
        %v1083 = vpop.f32.mrb[0].mxu0
        %v1084 = vadd.f32 %v1031, %v1083
        %v1085 = vpop.f32.mrb[0].mxu0
        %v1086 = vadd.f32 %v1033, %v1085
        %v1087 = vpop.f32.mrb[0].mxu0
        %v1088 = vadd.f32 %v1035, %v1087
        %v1089 = vpop.f32.mrb[0].mxu0
        %v1090 = vadd.f32 %v1037, %v1089
        %1091 = vmatprep.mubr.bf16.mxu0 0
        %1092 = vmatmul.mubr.bf16.gmra.mrb[0].mxu0 %v695
        %v1093 = vpop.f32.mrb[0].mxu0
        %v1094 = vadd.f32 %v1041, %v1093
        %v1095 = vpop.f32.mrb[0].mxu0
        %v1096 = vadd.f32 %v1043, %v1095
        %v1097 = vpop.f32.mrb[0].mxu0
        %v1098 = vadd.f32 %v1045, %v1097
        %v1099 = vpop.f32.mrb[0].mxu0
        %v1100 = vadd.f32 %v1047, %v1099
        %1101 = vdwg.mxu0
        %v1102 = vmax.f32 %v1084, 0.0
        %v1103 = vmax.f32 %v1086, 0.0
        %v1104 = vmax.f32 %v1088, 0.0
        %v1105 = vmax.f32 %v1090, 0.0
        %v1106 = vmax.f32 %v1094, 0.0
        %v1107 = vmax.f32 %v1096, 0.0
        %v1108 = vmax.f32 %v1098, 0.0
        %v1109 = vmax.f32 %v1100, 0.0
        %1110 = vst [vmem:[%s239] sm:$0xff] %v1102
        %1111 = vst [vmem:[%s239 + $0x8] sm:$0xff] %v1103
        %1112 = vst [vmem:[%s239 + $0x10] sm:$0xff] %v1104
        %1113 = vst [vmem:[%s239 + $0x18] sm:$0xff] %v1105
        %s1114 = scalar_lea.vmem %s239, 32
        %1115 = vst [vmem:[%s1114] sm:$0xff] %v1106
        %1116 = vst [vmem:[%s1114 + $0x8] sm:$0xff] %v1107
        %1117 = vst [vmem:[%s1114 + $0x10] sm:$0xff] %v1108
        %1118 = vst [vmem:[%s1114 + $0x18] sm:$0xff] %v1109
        %p1119 = scmp.lt.s32.totalorder %s17, 1
        %s1120 = scalar_select %p1119, %s17, 1
        %s1121 = smul.addr %s1120, 8
        %s1122 = smul.addr %s1121, 8
        %s1123 = scalar_lea.vmem %s5, %s1122
        // Predicated region
        $region45: #{recurrent_upconv_forward.1} parent=39 // pred_check
          %p1124 = pneg %p145
        $region46: #{recurrent_upconv_forward.1} parent=39 // pred_check_branch
          %1126 = sbr.rel (%p1124) target = $region48
        $region47: #{recurrent_upconv_forward.1} parent=39 // pred_region
          _
        $region48: #{recurrent_upconv_forward.1} parent=39 // pred_fallthru
          _
      $region40: #{recurrent_upconv_forward.1} parent=5 // pred_fallthru
        _
      %p1127 = scmp.le.s32.totalorder 2, %s12
      // Predicated region
      $region49: #{recurrent_upconv_forward.1} parent=5 // pred_check
        %p1128 = pneg %p1127
      $region50: #{recurrent_upconv_forward.1} parent=5 // pred_check_branch
        %1130 = sbr.rel (%p1128) target = $region52
      $region51: #{recurrent_upconv_forward.1} parent=5 // pred_region
        %s1131 = ssub.s32 %s12, 2
        // Predicated region
        $region53: #{recurrent_upconv_forward.1} parent=51 // pred_check
          %p1132 = pneg %p151
        $region54: #{recurrent_upconv_forward.1} parent=51 // pred_check_branch
          %1134 = sbr.rel (%p1132) target = $region56
        $region55: #{recurrent_upconv_forward.1} parent=51 // pred_region
          %p1135 = scmp.lt.s32.totalorder %s18, 1
          %s1136 = scalar_select %p1135, %s18, 1
          %s1137 = smul.addr %s1136, 8
          %s1138 = smul.addr %s1137, 8
          %s1139 = scalar_lea.vmem %s5, %s1138
        $region56: #{recurrent_upconv_forward.1} parent=51 // pred_fallthru
          _
      $region52: #{recurrent_upconv_forward.1} parent=5 // pred_fallthru
        _
    $region6: #{recurrent_upconv_forward.1} parent=1 // loop_footer
      %s16 = sadd.s32 1, %s12
    $region7: #{recurrent_upconv_forward.1} parent=1 // loop_footer_branch
      %11 = sbr.rel target = $region3
    $region8: #{recurrent_upconv_forward.1} parent=1 // loop_exit
      _
    %1140 = vsyncpa [#allocation3], 1
    %s1141 = scalar_lea.sflag [#allocation3], 1
    %1142 = vsyncpa %s1141, 1

</llo_original>
